<compile_context>
chip_gen: v7x
topology: tpu7x:2x2x1
jax: 0.10.0
libtpu: 0.0.40
codegen_flags: <defaults>
</compile_context>

<pallas_src>
import functools

import jax
import jax.numpy as jnp
from jax.experimental import pallas as pl
from jax.experimental.pallas import tpu as pltpu

_LANE = 128


def _round_up(n, m):
    return ((n + m - 1) // m) * m


def _actor_kernel(x_ref, w1_ref, b1_ref, b2_ref, b3_ref, w2_hbm, w3_hbm,
                  out_ref, w2_vmem, w3_vmem, dma_sem, *, max_action):
    # Kick off the big weight DMAs immediately so they overlap l1/l2 compute.
    cp_w2 = pltpu.make_async_copy(w2_hbm, w2_vmem, dma_sem.at[0])
    cp_w3 = pltpu.make_async_copy(w3_hbm, w3_vmem, dma_sem.at[1])
    cp_w2.start()
    cp_w3.start()

    # l1: (B, S) @ (S, 512) + b1, ReLU.  bf16 operands, f32 accumulation.
    h1 = jnp.dot(x_ref[...], w1_ref[...], preferred_element_type=jnp.float32)
    h1 = jnp.maximum(h1 + b1_ref[...], 0.0)                       # (B, 512) f32

    # l2: (B, 512) @ (512, 384) + b2, ReLU.
    cp_w2.wait()
    h2 = jnp.dot(h1.astype(jnp.bfloat16), w2_vmem[...],
                 preferred_element_type=jnp.float32)
    h2 = jnp.maximum(h2 + b2_ref[...], 0.0)                       # (B, 384) f32

    # l3: (B, 384) @ (384, 128) + b3, then max_action * tanh (EUP).
    cp_w3.wait()
    h3 = jnp.dot(h2.astype(jnp.bfloat16), w3_vmem[...],
                 preferred_element_type=jnp.float32)
    h3 = h3 + b3_ref[...]                                         # (B, 128) f32
    out_ref[...] = (max_action * jnp.tanh(h3)).astype(out_ref.dtype)


def actor_forward(x, params, max_action, action_dim):
    """x: (batch, state_dim) f32 -> (batch, action_dim) f32.

    `params` are the padded parameters from `init_actor_params`:
    weights bf16 with lane-padded dims, biases f32 shaped (1, padded_out).
    """
    w1, b1, w2, b2, w3, b3 = params
    batch = x.shape[0]
    h1p, h2p, outp = w1.shape[1], w2.shape[1], w3.shape[1]

    x_bf16 = x.astype(jnp.bfloat16)

    vmem = pl.BlockSpec(memory_space=pltpu.MemorySpace.VMEM)
    hbm = pl.BlockSpec(memory_space=pl.ANY)   # manual DMA inside the kernel

    flops = 2 * batch * (w1.shape[0] * h1p + h1p * h2p + h2p * outp)
    bytes_accessed = int(
        x_bf16.size * 2 + (w1.size + w2.size + w3.size) * 2
        + (b1.size + b2.size + b3.size) * 4 + batch * outp * 4)
    cost = pl.CostEstimate(flops=int(flops),
                           transcendentals=int(batch * outp),
                           bytes_accessed=bytes_accessed)

    kernel = functools.partial(_actor_kernel, max_action=float(max_action))

    out_padded = pl.pallas_call(
        kernel,
        out_shape=jax.ShapeDtypeStruct((batch, outp), jnp.float32),
        in_specs=[vmem, vmem, vmem, vmem, vmem, hbm, hbm],
        out_specs=vmem,
        scratch_shapes=[
            pltpu.VMEM(w2.shape, jnp.bfloat16),
            pltpu.VMEM(w3.shape, jnp.bfloat16),
            pltpu.SemaphoreType.DMA((2,)),
        ],
        cost_estimate=cost,
    )(x_bf16, w1, b1, b2, b3, w2, w3)

    # Padded columns are exactly zero; slice back to the true action_dim.
    return out_padded[:, :action_dim]


def init_actor_params(key, state_dim, action_dim):
    """PyTorch-style nn.Linear init (U[-1/sqrt(fan_in), +]), lane-padded.

    Padding is done once here (not per call): weights are zero-padded to
    (in_padded, out_padded) and cast to bf16; biases are zero-padded f32
    rows of shape (1, out_padded).  Zero padding leaves the math unchanged.
    """
    h1, h2 = 400, 300
    h1p, h2p = _round_up(h1, _LANE), _round_up(h2, _LANE)
    adp = _round_up(action_dim, _LANE)

    def linear(key, fan_in, fan_out, in_padded, out_padded):
        kw, kb = jax.random.split(key)
        bound = 1.0 / jnp.sqrt(jnp.float32(fan_in))
        w = jax.random.uniform(kw, (fan_in, fan_out), jnp.float32, -bound, bound)
        b = jax.random.uniform(kb, (fan_out,), jnp.float32, -bound, bound)
        w_p = jnp.zeros((in_padded, out_padded), jnp.float32)
        w_p = w_p.at[:fan_in, :fan_out].set(w)
        b_p = jnp.zeros((1, out_padded), jnp.float32).at[0, :fan_out].set(b)
        return w_p.astype(jnp.bfloat16), b_p

    k1, k2, k3 = jax.random.split(key, 3)
    w1, b1 = linear(k1, state_dim, h1, state_dim, h1p)
    w2, b2 = linear(k2, h1, h2, h1p, h2p)
    w3, b3 = linear(k3, h2, action_dim, h2p, adp)
    return (w1, b1, w2, b2, w3, b3)


if __name__ == "__main__":
    state_dim = 16
    action_dim = 4
    max_action = 2.0
    batch = 2

    key = jax.random.PRNGKey(0)
    k_params, k_x = jax.random.split(key)

    params = init_actor_params(k_params, state_dim, action_dim)
    x = jax.random.normal(k_x, (batch, state_dim), jnp.float32)

    out = actor_forward(x, params, max_action, action_dim)
    jax.block_until_ready(out)

    # Sanity check against a plain-JAX f32 reference using the same
    # (bf16-rounded) weights.  Loose tolerance accounts for bf16 activation
    # rounding inside the kernel (a test artifact, not a semantics change).
    w1, b1, w2, b2, w3, b3 = params
    w1f, w2f, w3f = (w.astype(jnp.float32) for w in (w1, w2, w3))
    ref = jnp.maximum(x @ w1f + b1, 0.0)
    ref = jnp.maximum(ref @ w2f + b2, 0.0)
    ref = (max_action * jnp.tanh(ref @ w3f + b3))[:, :action_dim]

    assert out.shape == (batch, action_dim)
    assert jnp.allclose(out, ref, atol=5e-2, rtol=5e-2)

    print("KERNEL_OK")
</pallas_src>

<mosaic_0001>
module attributes {stable_mosaic.version = 11 : i64} {
  func.func @_actor_kernel(%arg0: memref<2x16xbf16, #tpu.memory_space<vmem>>, %arg1: memref<16x512xbf16, #tpu.memory_space<vmem>>, %arg2: memref<1x512xf32, #tpu.memory_space<vmem>>, %arg3: memref<1x384xf32, #tpu.memory_space<vmem>>, %arg4: memref<1x128xf32, #tpu.memory_space<vmem>>, %arg5: memref<512x384xbf16, #tpu.memory_space<any>>, %arg6: memref<384x128xbf16, #tpu.memory_space<any>>, %arg7: memref<2x128xf32, #tpu.memory_space<vmem>>, %arg8: memref<512x384xbf16, #tpu.memory_space<vmem>>, %arg9: memref<384x128xbf16, #tpu.memory_space<vmem>>, %arg10: memref<2x!tpu.dma_semaphore, #tpu.memory_space<semaphore_mem>>) attributes {dimension_semantics = [], scalar_prefetch = 0 : i64, scratch_operands = 3 : i64, tpu.core_type = #tpu.core_type<tc>} {
    %c0_i32 = arith.constant 0 : i32
    %0 = tpu.memref_slice %arg10[%c0_i32] : memref<2x!tpu.dma_semaphore, #tpu.memory_space<semaphore_mem>> -> memref<1x!tpu.dma_semaphore, #tpu.memory_space<semaphore_mem>>
    %1 = tpu.memref_squeeze %0 : memref<1x!tpu.dma_semaphore, #tpu.memory_space<semaphore_mem>> -> memref<!tpu.dma_semaphore, #tpu.memory_space<semaphore_mem>>
    tpu.enqueue_dma source(%arg5 : memref<512x384xbf16, #tpu.memory_space<any>>) target(%arg8 : memref<512x384xbf16, #tpu.memory_space<vmem>>) target_semaphore(%1 : memref<!tpu.dma_semaphore, #tpu.memory_space<semaphore_mem>>)
    %c1_i32 = arith.constant 1 : i32
    %2 = tpu.memref_slice %arg10[%c1_i32] : memref<2x!tpu.dma_semaphore, #tpu.memory_space<semaphore_mem>> -> memref<1x!tpu.dma_semaphore, #tpu.memory_space<semaphore_mem>>
    %3 = tpu.memref_squeeze %2 : memref<1x!tpu.dma_semaphore, #tpu.memory_space<semaphore_mem>> -> memref<!tpu.dma_semaphore, #tpu.memory_space<semaphore_mem>>
    tpu.enqueue_dma source(%arg6 : memref<384x128xbf16, #tpu.memory_space<any>>) target(%arg9 : memref<384x128xbf16, #tpu.memory_space<vmem>>) target_semaphore(%3 : memref<!tpu.dma_semaphore, #tpu.memory_space<semaphore_mem>>)
    %c0 = arith.constant 0 : index
    %c0_0 = arith.constant 0 : index
    %4 = vector.load %arg0[%c0, %c0_0] : memref<2x16xbf16, #tpu.memory_space<vmem>>, vector<2x16xbf16>
    %c0_1 = arith.constant 0 : index
    %c0_2 = arith.constant 0 : index
    %5 = vector.load %arg1[%c0_1, %c0_2] : memref<16x512xbf16, #tpu.memory_space<vmem>>, vector<16x512xbf16>
    %cst = arith.constant dense<0.000000e+00> : vector<2x512xf32>
    %6 = tpu.matmul %4, %5, %cst {dimension_numbers = #tpu.dot_dimension_numbers<[1], [0], [0], [1], [0, 0, 1, 1], [], []>} : vector<2x16xbf16>, vector<16x512xbf16>, vector<2x512xf32> -> vector<2x512xf32>
    %c0_3 = arith.constant 0 : index
    %c0_4 = arith.constant 0 : index
    %7 = vector.load %arg2[%c0_3, %c0_4] : memref<1x512xf32, #tpu.memory_space<vmem>>, vector<1x512xf32>
    %8 = vector.broadcast %7 : vector<1x512xf32> to vector<2x512xf32>
    %9 = arith.addf %6, %8 : vector<2x512xf32>
    %cst_5 = arith.constant 0.000000e+00 : f32
    %10 = vector.broadcast %cst_5 : f32 to vector<2x512xf32>
    %11 = arith.maximumf %9, %10 : vector<2x512xf32>
    %c0_i32_6 = arith.constant 0 : i32
    %12 = tpu.memref_slice %arg10[%c0_i32_6] : memref<2x!tpu.dma_semaphore, #tpu.memory_space<semaphore_mem>> -> memref<1x!tpu.dma_semaphore, #tpu.memory_space<semaphore_mem>>
    %13 = tpu.memref_squeeze %12 : memref<1x!tpu.dma_semaphore, #tpu.memory_space<semaphore_mem>> -> memref<!tpu.dma_semaphore, #tpu.memory_space<semaphore_mem>>
    tpu.wait_dma2 semaphore(%13 : memref<!tpu.dma_semaphore, #tpu.memory_space<semaphore_mem>>) src(%arg5 : memref<512x384xbf16, #tpu.memory_space<any>>) dst(%arg8 : memref<512x384xbf16, #tpu.memory_space<vmem>>)
    %14 = arith.truncf %11 : vector<2x512xf32> to vector<2x512xbf16>
    %c0_7 = arith.constant 0 : index
    %c0_8 = arith.constant 0 : index
    %15 = vector.load %arg8[%c0_7, %c0_8] : memref<512x384xbf16, #tpu.memory_space<vmem>>, vector<512x384xbf16>
    %cst_9 = arith.constant dense<0.000000e+00> : vector<2x384xf32>
    %16 = tpu.matmul %14, %15, %cst_9 {dimension_numbers = #tpu.dot_dimension_numbers<[1], [0], [0], [1], [0, 0, 1, 1], [], []>} : vector<2x512xbf16>, vector<512x384xbf16>, vector<2x384xf32> -> vector<2x384xf32>
    %c0_10 = arith.constant 0 : index
    %c0_11 = arith.constant 0 : index
    %17 = vector.load %arg3[%c0_10, %c0_11] : memref<1x384xf32, #tpu.memory_space<vmem>>, vector<1x384xf32>
    %18 = vector.broadcast %17 : vector<1x384xf32> to vector<2x384xf32>
    %19 = arith.addf %16, %18 : vector<2x384xf32>
    %cst_12 = arith.constant 0.000000e+00 : f32
    %20 = vector.broadcast %cst_12 : f32 to vector<2x384xf32>
    %21 = arith.maximumf %19, %20 : vector<2x384xf32>
    %c1_i32_13 = arith.constant 1 : i32
    %22 = tpu.memref_slice %arg10[%c1_i32_13] : memref<2x!tpu.dma_semaphore, #tpu.memory_space<semaphore_mem>> -> memref<1x!tpu.dma_semaphore, #tpu.memory_space<semaphore_mem>>
    %23 = tpu.memref_squeeze %22 : memref<1x!tpu.dma_semaphore, #tpu.memory_space<semaphore_mem>> -> memref<!tpu.dma_semaphore, #tpu.memory_space<semaphore_mem>>
    tpu.wait_dma2 semaphore(%23 : memref<!tpu.dma_semaphore, #tpu.memory_space<semaphore_mem>>) src(%arg6 : memref<384x128xbf16, #tpu.memory_space<any>>) dst(%arg9 : memref<384x128xbf16, #tpu.memory_space<vmem>>)
    %24 = arith.truncf %21 : vector<2x384xf32> to vector<2x384xbf16>
    %c0_14 = arith.constant 0 : index
    %c0_15 = arith.constant 0 : index
    %25 = vector.load %arg9[%c0_14, %c0_15] : memref<384x128xbf16, #tpu.memory_space<vmem>>, vector<384x128xbf16>
    %cst_16 = arith.constant dense<0.000000e+00> : vector<2x128xf32>
    %26 = tpu.matmul %24, %25, %cst_16 {dimension_numbers = #tpu.dot_dimension_numbers<[1], [0], [0], [1], [0, 0, 1, 1], [], []>} : vector<2x384xbf16>, vector<384x128xbf16>, vector<2x128xf32> -> vector<2x128xf32>
    %c0_17 = arith.constant 0 : index
    %c0_18 = arith.constant 0 : index
    %27 = vector.load %arg4[%c0_17, %c0_18] : memref<1x128xf32, #tpu.memory_space<vmem>>, vector<1x128xf32>
    %28 = vector.broadcast %27 : vector<1x128xf32> to vector<2x128xf32>
    %29 = arith.addf %26, %28 : vector<2x128xf32>
    %30 = math.tanh %29 : vector<2x128xf32>
    %cst_19 = arith.constant 2.000000e+00 : f32
    %31 = vector.broadcast %cst_19 : f32 to vector<2x128xf32>
    %32 = arith.mulf %31, %30 : vector<2x128xf32>
    %c0_20 = arith.constant 0 : index
    %c0_21 = arith.constant 0 : index
    %33 = vector.load %arg7[%c0_20, %c0_21] : memref<2x128xf32, #tpu.memory_space<vmem>>, vector<2x128xf32>
    tpu.vector_store %arg7[%c0_20, %c0_21], %32 {strides = array<i32>} : memref<2x128xf32, #tpu.memory_space<vmem>>, vector<2x128xf32>,
    return
  }
}

</mosaic_0001>

<llo_original>
// kernel: tpu_custom_call.1
$region0: #{tpu_custom_call.1}
  #allocation0 [shape = 'u32[]', space=smem, size = 0x4, offset = 0x4, fixed_abs, tag = 'smem constant byte address 0x4 - core index']
  #allocation1 [shape = 'u32[144,128]{1,0:T(1,128)}', space=vmem, size = 0x12000, scoped, tag = 'internal scratch']
  #allocation2 [shape = 'bf16[512,384]{1,0:T(16,128)(2,1)}', space=vmem, size = 0x60000, scoped, tag = 'scratch operand']
  #allocation3 [shape = 'bf16[384,128]{1,0:T(16,128)(2,1)}', space=vmem, size = 0x18000, scoped, tag = 'scratch operand']
  #allocation4 [shape = 's32[2]{0}', space=sflag, size = 0x8, scoped, tag = 'scratch operand']
  #allocation11 [shape = 's32[]', space=sflag, size = 0x4, offset = 0, fixed_abs, tag = 'sflag constant byte address 0x0 - dummy sync flag']
  #allocation13 [shape = 's32[]', space=sflag, size = 0x4, offset = 0, fixed_abs, tag = 'sflag constant byte address 0x0 - dummy sync flag']
  #allocation14 [shape = 's32[]', space=sflag, size = 0x4, offset = 0, fixed_abs, tag = 'sflag constant byte address 0x0 - dummy sync flag']
  #allocation15 [shape = 'u32[]', space=smem, size = 0x4, offset = 0x44, fixed_abs, tag = 'smem constant byte address 0x44 - assertion arg 0']
  #allocation16 [shape = 'u32[]', space=smem, size = 0x4, offset = 0x48, fixed_abs, tag = 'smem constant byte address 0x48 - assertion arg 1']
  %s0 = inlined_call_operand.hbm [shape: bf16[2,16], index: 0, kind: input, shape index: {}]
  %s1 = inlined_call_operand.hbm [shape: bf16[16,512], index: 1, kind: input, shape index: {}]
  %s2 = inlined_call_operand.vmem [shape: f32[1,512], index: 2, kind: input, shape index: {}]
  %s3 = inlined_call_operand.vmem [shape: f32[1,384], index: 3, kind: input, shape index: {}]
  %s4 = inlined_call_operand.vmem [shape: f32[1,128], index: 4, kind: input, shape index: {}]
  %s5 = inlined_call_operand.hbm [shape: bf16[512,384], index: 5, kind: input, shape index: {}]
  %s6 = inlined_call_operand.hbm [shape: bf16[384,128], index: 6, kind: input, shape index: {}]
  %s7 = inlined_call_operand.hbm [shape: f32[2,128], index: 7, kind: output, shape index: {}]
  %s8 = sld [smem:[#allocation0]]
  $region42: #{tpu_custom_call.1} parent=0
    _
  %s10 = ssub.s32 1, %s8
  %s11 = scalar_select 0, %s10, %s8
  $region1: #{tpu_custom_call.1} parent=0
    #allocation5 [shape = 'u8[512]{0}', space=vmem, size = 0x400, scoped, tag = 'input window, operand 0, single buffered']
    #allocation6 [shape = 's32[1]{0}', space=sflag, size = 0x4, scoped, tag = 'scoped memory for tpu_custom_call.1']
    #allocation7 [shape = 's32[1]{0}', space=sflag, size = 0x4, scoped, tag = 'scoped memory for tpu_custom_call.1']
    #allocation8 [shape = 'u8[16384]{0}', space=vmem, size = 0x4000, scoped, tag = 'input window, operand 1, single buffered']
    #allocation9 [shape = 's32[1]{0}', space=sflag, size = 0x4, scoped, tag = 'scoped memory for tpu_custom_call.1']
    #allocation10 [shape = 'u8[1024]{0}', space=vmem, size = 0x400, scoped, tag = 'output window, operand 0, single buffered']
    #allocation12 [shape = 'u32[9]{0}', space=smem, size = 0x24, scoped, tag = 'DMA stride descriptor']
    %12 = vsyncpa [#allocation6], 0
    %13 = vsyncpa [#allocation9], 0
    %14 = vsyncpa [#allocation7], 0
    // Predicated region
    $region2: #{tpu_custom_call.1} parent=1 // pred_check
      _
    $region3: #{tpu_custom_call.1} parent=1 // pred_check_branch
      %16 = sbr.rel (0) target = $region5
    $region4: #{tpu_custom_call.1} parent=1 // pred_region
      %s18 = ssub.s32 16, 16
      %19 = vsyncadd [#allocation6], %s18
      %s21 = sshll.u32 [#allocation5], 4
      %s22 = int_to_ptr.vmem [resolvable:$true] %s21
      %24 = dma.hbm_to_vmem [thread:$0]  %s0, 16, %s22, [#allocation6]
    $region5: #{tpu_custom_call.1} parent=1 // pred_fallthru
      _
    // Predicated region
    $region6: #{tpu_custom_call.1} parent=1 // pred_check
      _
    $region7: #{tpu_custom_call.1} parent=1 // pred_check_branch
      %26 = sbr.rel (0) target = $region9
    $region8: #{tpu_custom_call.1} parent=1 // pred_region
      %s28 = ssub.s32 512, 512
      %29 = vsyncadd [#allocation9], %s28
      %s30 = sshll.u32 [#allocation8], 4
      %s31 = int_to_ptr.vmem [resolvable:$true] %s30
      %36 = dma.hbm_to_vmem [thread:$0]  %s1, 512, %s31, [#allocation9], 256, 256, 16
    $region9: #{tpu_custom_call.1} parent=1 // pred_fallthru
      _
    // Predicated region
    $region10: #{tpu_custom_call.1} parent=1 // pred_check
      _
    $region11: #{tpu_custom_call.1} parent=1 // pred_check_branch
      %38 = sbr.rel (0) target = $region13
    $region12: #{tpu_custom_call.1} parent=1 // pred_region
      _
    $region13: #{tpu_custom_call.1} parent=1 // pred_fallthru
      _
    // Predicated region
    $region14: #{tpu_custom_call.1} parent=1 // pred_check
      _
    $region15: #{tpu_custom_call.1} parent=1 // pred_check_branch
      %40 = sbr.rel (0) target = $region17
    $region16: #{tpu_custom_call.1} parent=1 // pred_region
      _
    $region17: #{tpu_custom_call.1} parent=1 // pred_fallthru
      _
    // Predicated region
    $region18: #{tpu_custom_call.1} parent=1 // pred_check
      _
    $region19: #{tpu_custom_call.1} parent=1 // pred_check_branch
      %42 = sbr.rel (0) target = $region21
    $region20: #{tpu_custom_call.1} parent=1 // pred_region
      _
    $region21: #{tpu_custom_call.1} parent=1 // pred_fallthru
      _
    // Predicated region
    $region22: #{tpu_custom_call.1} parent=1 // pred_check
      _
    $region23: #{tpu_custom_call.1} parent=1 // pred_check_branch
      %44 = sbr.rel (0) target = $region25
    $region24: #{tpu_custom_call.1} parent=1 // pred_region
      %45 = dma.done [#allocation6], 16
    $region25: #{tpu_custom_call.1} parent=1 // pred_fallthru
      _
    // Predicated region
    $region26: #{tpu_custom_call.1} parent=1 // pred_check
      _
    $region27: #{tpu_custom_call.1} parent=1 // pred_check_branch
      %47 = sbr.rel (0) target = $region29
    $region28: #{tpu_custom_call.1} parent=1 // pred_region
      %48 = dma.done [#allocation9], 512
    $region29: #{tpu_custom_call.1} parent=1 // pred_fallthru
      _
    %s51 = sshll.u32 1, 14
    %s52 = sxor.u32 4294967295, %s51
    %s54 = sld [smem:[#allocation0]]
    %s55 = sadd.s32 2, %s54
    %s57 = sshll.u32 7, 26
    %s58 = sxor.u32 4294967295, %s57
    %s59 = sand.u32 0, %s58
    %s60 = sshll.u32 %s55, 26
    %s61 = sor.u32 %s59, %s60
    %s62 = sshll.u32 [#allocation2], 4
    %s63 = int_to_ptr.vmem [resolvable:$true] %s62
    %66 = sst [smem:[#allocation12]] 384
    %s67 = scalar_lea.smem [#allocation12], 1
    %68 = sst [smem:[%s67]] 384
    %s69 = scalar_lea.smem [#allocation12], 2
    %70 = sst [smem:[%s69]] 3
    %s71 = scalar_lea.smem [#allocation12], 3
    %72 = sst [smem:[%s71]] 64
    %s73 = scalar_lea.smem [#allocation12], 4
    %74 = sst [smem:[%s73]] 128
    %s75 = scalar_lea.smem [#allocation12], 5
    %76 = sst [smem:[%s75]] 2
    %s77 = scalar_lea.smem [#allocation12], 6
    %78 = sst [smem:[%s77]] 192
    %s79 = scalar_lea.smem [#allocation12], 7
    %80 = sst [smem:[%s79]] 64
    %s81 = scalar_lea.smem [#allocation12], 8
    %82 = sst [smem:[%s81]] 4
    %84 = dma.general %s5, 12288, %s63, [#allocation4], [#allocation11], [#allocation12], %s61, 0
    %s85 = scalar_lea.sflag [#allocation4], 1
    // Predicated region
    $region30: #{tpu_custom_call.1} parent=1 // pred_check
      _
    $region31: #{tpu_custom_call.1} parent=1 // pred_check_branch
      %87 = sbr.rel target = $region33
    $region32: #{tpu_custom_call.1} parent=1 // pred_region
      %88 = sst [smem:[#allocation15]] [#allocation14]
      %89 = sst [smem:[#allocation16]] [#allocation13]
    $region33: #{tpu_custom_call.1} parent=1 // pred_fallthru
      _
    %91 = shalt.err (0)
    %s93 = sshll.u32 [#allocation3], 4
    %s94 = int_to_ptr.vmem [resolvable:$true] %s93
    %96 = dma.hbm_to_vmem [thread:$0]  %s6, 3072, %s94, %s85
    %v97 = vld [vmem:[#allocation5] sm:$0x1]
    %v98 = vld [vmem:[#allocation8] sm:$0xff]
    %v99 = vld [vmem:[#allocation8 + $0x8] sm:$0xff]
    %v100 = vld [vmem:[#allocation8 + $0x10] sm:$0xff]
    %v101 = vld [vmem:[#allocation8 + $0x18] sm:$0xff]
    %v102 = vld [vmem:[%s2] sm:$0xf]
    %v104 = vlaneseq
    %v105 = vshrl.u32 %v104, 7
    %v106 = vsub.s32 0, %v105
    %v107 = vrot.slane %v102, %v106
    %v108 = vlaneseq
    %v109 = vshrl.u32 %v108, 7
    %v110 = vsub.s32 1, %v109
    %v111 = vrot.slane %v102, %v110
    %v112 = vlaneseq
    %v113 = vshrl.u32 %v112, 7
    %v114 = vsub.s32 2, %v113
    %v115 = vrot.slane %v102, %v114
    %v116 = vlaneseq
    %v117 = vshrl.u32 %v116, 7
    %v118 = vsub.s32 3, %v117
    %v119 = vrot.slane %v102, %v118
    %v128 = vunpack.c.l.b16 %v98
    %v129 = vunpack.c.h.b16 %v98
    %v130 = vunpack.c.l.b16 %v99
    %v131 = vunpack.c.h.b16 %v99
    %v132 = vunpack.c.l.b16 %v100
    %v133 = vunpack.c.h.b16 %v100
    %v134 = vunpack.c.l.b16 %v101
    %v135 = vunpack.c.h.b16 %v101
    %v136 = vpack.c.b16 %v132, %v128
    %v137 = vpack.c.b16 %v133, %v129
    %v138 = vpack.c.b16 %v134, %v130
    %v139 = vpack.c.b16 %v135, %v131
    %vm144 = vcmask 130048
    %v146 = vsel %vm144, %v97, 0
    %148 = vmatprep.subr.bf16.mxu0 %v137
    %149 = vmatpush1.bf16.msra.mxu0 %v136
    %150 = vmatprep.subr.bf16.mxu0 0
    %151 = vmatpush1.bf16.msra.mxu0 0
    %152 = vmatprep.subr.bf16.mxu0 0
    %153 = vmatpush1.bf16.msra.mxu0 0
    %154 = vmatprep.subr.bf16.mxu0 0
    %155 = vmatpush1.bf16.msra.mxu0 0
    %156 = vmatprep.subr.bf16.mxu0 0
    %157 = vmatpush1.bf16.msra.mxu0 0
    %158 = vmatprep.subr.bf16.mxu0 0
    %159 = vmatpush1.bf16.msra.mxu0 0
    %160 = vmatprep.subr.bf16.mxu0 0
    %161 = vmatpush1.bf16.msra.mxu0 0
    %162 = vmatprep.subr.bf16.mxu0 0
    %163 = vmatpush1.bf16.msra.mxu0 0
    %164 = vmatprep.subr.bf16.mxu0 0
    %165 = vmatpush1.bf16.msra.mxu0 0
    %166 = vmatprep.subr.bf16.mxu0 0
    %167 = vmatpush1.bf16.msra.mxu0 0
    %168 = vmatprep.subr.bf16.mxu0 0
    %169 = vmatpush1.bf16.msra.mxu0 0
    %170 = vmatprep.subr.bf16.mxu0 0
    %171 = vmatpush1.bf16.msra.mxu0 0
    %172 = vmatprep.subr.bf16.mxu0 0
    %173 = vmatpush1.bf16.msra.mxu0 0
    %174 = vmatprep.subr.bf16.mxu0 0
    %175 = vmatpush1.bf16.msra.mxu0 0
    %176 = vmatprep.subr.bf16.mxu0 0
    %177 = vmatpush1.bf16.msra.mxu0 0
    %178 = vmatprep.subr.bf16.mxu0 0
    %179 = vmatpush1.bf16.msra.mxu0 0
    %180 = vmatprep.mubr.bf16.mxu0 0
    %181 = vmatmul.mubr.bf16.gmra.mrb[0].mxu0 %v146
    %v182 = vpop.f32.mrb[0].mxu0
    %v183 = vadd.f32 %v107, %v182
    %v184 = vpop.f32.mrb[0].mxu0
    %v185 = vadd.f32 %v111, %v184
    %v186 = vpop.f32.mrb[0].mxu0
    %v187 = vpop.f32.mrb[0].mxu0
    %188 = vdwg.mxu0
    %189 = vmatprep.subr.bf16.mxu0 %v139
    %190 = vmatpush1.bf16.msra.mxu0 %v138
    %191 = vmatprep.subr.bf16.mxu0 0
    %192 = vmatpush1.bf16.msra.mxu0 0
    %193 = vmatprep.subr.bf16.mxu0 0
    %194 = vmatpush1.bf16.msra.mxu0 0
    %195 = vmatprep.subr.bf16.mxu0 0
    %196 = vmatpush1.bf16.msra.mxu0 0
    %197 = vmatprep.subr.bf16.mxu0 0
    %198 = vmatpush1.bf16.msra.mxu0 0
    %199 = vmatprep.subr.bf16.mxu0 0
    %200 = vmatpush1.bf16.msra.mxu0 0
    %201 = vmatprep.subr.bf16.mxu0 0
    %202 = vmatpush1.bf16.msra.mxu0 0
    %203 = vmatprep.subr.bf16.mxu0 0
    %204 = vmatpush1.bf16.msra.mxu0 0
    %205 = vmatprep.subr.bf16.mxu0 0
    %206 = vmatpush1.bf16.msra.mxu0 0
    %207 = vmatprep.subr.bf16.mxu0 0
    %208 = vmatpush1.bf16.msra.mxu0 0
    %209 = vmatprep.subr.bf16.mxu0 0
    %210 = vmatpush1.bf16.msra.mxu0 0
    %211 = vmatprep.subr.bf16.mxu0 0
    %212 = vmatpush1.bf16.msra.mxu0 0
    %213 = vmatprep.subr.bf16.mxu0 0
    %214 = vmatpush1.bf16.msra.mxu0 0
    %215 = vmatprep.subr.bf16.mxu0 0
    %216 = vmatpush1.bf16.msra.mxu0 0
    %217 = vmatprep.subr.bf16.mxu0 0
    %218 = vmatpush1.bf16.msra.mxu0 0
    %219 = vmatprep.subr.bf16.mxu0 0
    %220 = vmatpush1.bf16.msra.mxu0 0
    %221 = vmatprep.mubr.bf16.mxu0 0
    %222 = vmatmul.mubr.bf16.gmra.mrb[0].mxu0 %v146
    %v223 = vpop.f32.mrb[0].mxu0
    %v224 = vadd.f32 %v115, %v223
    %v225 = vpop.f32.mrb[0].mxu0
    %v226 = vadd.f32 %v119, %v225
    %v227 = vpop.f32.mrb[0].mxu0
    %v228 = vpop.f32.mrb[0].mxu0
    %229 = vdwg.mxu0
    %v230 = vmax.f32 %v183, 0.0
    %v231 = vmax.f32 %v185, 0.0
    %v232 = vmax.f32 %v224, 0.0
    %v233 = vmax.f32 %v226, 0.0
    %s234 = smul.u32 4, 64
    %s235 = smul.u32 %s234, 3
    %s236 = sshll.u32 %s235, 4
    %237 = dma.done [#allocation4], %s236
    %v238 = vpack.c.bf16 %v230, %v230
    %v239 = vpack.c.bf16 %v231, %v231
    %v240 = vpack.c.bf16 %v232, %v232
    %v241 = vpack.c.bf16 %v233, %v233
    %v242 = vld [vmem:[#allocation2] sm:$0xff]
    %v243 = vld [vmem:[#allocation2 + $0x8] sm:$0xff]
    %v244 = vld [vmem:[#allocation2 + $0x10] sm:$0xff]
    %v245 = vld [vmem:[#allocation2 + $0x18] sm:$0xff]
    %v246 = vld [vmem:[#allocation2 + $0x20] sm:$0xff]
    %v247 = vld [vmem:[#allocation2 + $0x28] sm:$0xff]
    %v248 = vld [vmem:[#allocation2 + $0x30] sm:$0xff]
    %v249 = vld [vmem:[#allocation2 + $0x38] sm:$0xff]
    %v250 = vld [vmem:[#allocation2 + $0x40] sm:$0xff]
    %v251 = vld [vmem:[#allocation2 + $0x48] sm:$0xff]
    %v252 = vld [vmem:[#allocation2 + $0x50] sm:$0xff]
    %v253 = vld [vmem:[#allocation2 + $0x58] sm:$0xff]
    %v254 = vld [vmem:[#allocation2 + $0x60] sm:$0xff]
    %v255 = vld [vmem:[#allocation2 + $0x68] sm:$0xff]
    %v256 = vld [vmem:[#allocation2 + $0x70] sm:$0xff]
    %v257 = vld [vmem:[#allocation2 + $0x78] sm:$0xff]
    %v258 = vld [vmem:[#allocation2 + $0x80] sm:$0xff]
    %v259 = vld [vmem:[#allocation2 + $0x88] sm:$0xff]
    %v260 = vld [vmem:[#allocation2 + $0x90] sm:$0xff]
    %v261 = vld [vmem:[#allocation2 + $0x98] sm:$0xff]
    %v262 = vld [vmem:[#allocation2 + $0xa0] sm:$0xff]
    %v263 = vld [vmem:[#allocation2 + $0xa8] sm:$0xff]
    %v264 = vld [vmem:[#allocation2 + $0xb0] sm:$0xff]
    %v265 = vld [vmem:[#allocation2 + $0xb8] sm:$0xff]
    %v266 = vld [vmem:[#allocation2 + $0xc0] sm:$0xff]
    %v267 = vld [vmem:[#allocation2 + $0xc8] sm:$0xff]
    %v268 = vld [vmem:[#allocation2 + $0xd0] sm:$0xff]
    %v269 = vld [vmem:[#allocation2 + $0xd8] sm:$0xff]
    %v270 = vld [vmem:[#allocation2 + $0xe0] sm:$0xff]
    %v271 = vld [vmem:[#allocation2 + $0xe8] sm:$0xff]
    %v272 = vld [vmem:[#allocation2 + $0xf0] sm:$0xff]
    %v273 = vld [vmem:[#allocation2 + $0xf8] sm:$0xff]
    %v274 = vld [vmem:[#allocation2 + $0x100] sm:$0xff]
    %v275 = vld [vmem:[#allocation2 + $0x108] sm:$0xff]
    %v276 = vld [vmem:[#allocation2 + $0x110] sm:$0xff]
    %v277 = vld [vmem:[#allocation2 + $0x118] sm:$0xff]
    %v278 = vld [vmem:[#allocation2 + $0x120] sm:$0xff]
    %v279 = vld [vmem:[#allocation2 + $0x128] sm:$0xff]
    %v280 = vld [vmem:[#allocation2 + $0x130] sm:$0xff]
    %v281 = vld [vmem:[#allocation2 + $0x138] sm:$0xff]
    %v282 = vld [vmem:[#allocation2 + $0x140] sm:$0xff]
    %v283 = vld [vmem:[#allocation2 + $0x148] sm:$0xff]
    %v284 = vld [vmem:[#allocation2 + $0x150] sm:$0xff]
    %v285 = vld [vmem:[#allocation2 + $0x158] sm:$0xff]
    %v286 = vld [vmem:[#allocation2 + $0x160] sm:$0xff]
    %v287 = vld [vmem:[#allocation2 + $0x168] sm:$0xff]
    %v288 = vld [vmem:[#allocation2 + $0x170] sm:$0xff]
    %v289 = vld [vmem:[#allocation2 + $0x178] sm:$0xff]
    %v290 = vld [vmem:[#allocation2 + $0x180] sm:$0xff]
    %v291 = vld [vmem:[#allocation2 + $0x188] sm:$0xff]
    %v292 = vld [vmem:[#allocation2 + $0x190] sm:$0xff]
    %v293 = vld [vmem:[#allocation2 + $0x198] sm:$0xff]
    %v294 = vld [vmem:[#allocation2 + $0x1a0] sm:$0xff]
    %v295 = vld [vmem:[#allocation2 + $0x1a8] sm:$0xff]
    %v296 = vld [vmem:[#allocation2 + $0x1b0] sm:$0xff]
    %v297 = vld [vmem:[#allocation2 + $0x1b8] sm:$0xff]
    %v298 = vld [vmem:[#allocation2 + $0x1c0] sm:$0xff]
    %v299 = vld [vmem:[#allocation2 + $0x1c8] sm:$0xff]
    %v300 = vld [vmem:[#allocation2 + $0x1d0] sm:$0xff]
    %v301 = vld [vmem:[#allocation2 + $0x1d8] sm:$0xff]
    %v302 = vld [vmem:[#allocation2 + $0x1e0] sm:$0xff]
    %v303 = vld [vmem:[#allocation2 + $0x1e8] sm:$0xff]
    %v304 = vld [vmem:[#allocation2 + $0x1f0] sm:$0xff]
    %v305 = vld [vmem:[#allocation2 + $0x1f8] sm:$0xff]
    %v306 = vld [vmem:[#allocation2 + $0x200] sm:$0xff]
    %v307 = vld [vmem:[#allocation2 + $0x208] sm:$0xff]
    %v308 = vld [vmem:[#allocation2 + $0x210] sm:$0xff]
    %v309 = vld [vmem:[#allocation2 + $0x218] sm:$0xff]
    %v310 = vld [vmem:[#allocation2 + $0x220] sm:$0xff]
    %v311 = vld [vmem:[#allocation2 + $0x228] sm:$0xff]
    %v312 = vld [vmem:[#allocation2 + $0x230] sm:$0xff]
    %v313 = vld [vmem:[#allocation2 + $0x238] sm:$0xff]
    %v314 = vld [vmem:[#allocation2 + $0x240] sm:$0xff]
    %v315 = vld [vmem:[#allocation2 + $0x248] sm:$0xff]
    %v316 = vld [vmem:[#allocation2 + $0x250] sm:$0xff]
    %v317 = vld [vmem:[#allocation2 + $0x258] sm:$0xff]
    %v318 = vld [vmem:[#allocation2 + $0x260] sm:$0xff]
    %v319 = vld [vmem:[#allocation2 + $0x268] sm:$0xff]
    %v320 = vld [vmem:[#allocation2 + $0x270] sm:$0xff]
    %v321 = vld [vmem:[#allocation2 + $0x278] sm:$0xff]
    %v322 = vld [vmem:[#allocation2 + $0x280] sm:$0xff]
    %v323 = vld [vmem:[#allocation2 + $0x288] sm:$0xff]
    %v324 = vld [vmem:[#allocation2 + $0x290] sm:$0xff]
    %v325 = vld [vmem:[#allocation2 + $0x298] sm:$0xff]
    %v326 = vld [vmem:[#allocation2 + $0x2a0] sm:$0xff]
    %v327 = vld [vmem:[#allocation2 + $0x2a8] sm:$0xff]
    %v328 = vld [vmem:[#allocation2 + $0x2b0] sm:$0xff]
    %v329 = vld [vmem:[#allocation2 + $0x2b8] sm:$0xff]
    %v330 = vld [vmem:[#allocation2 + $0x2c0] sm:$0xff]
    %v331 = vld [vmem:[#allocation2 + $0x2c8] sm:$0xff]
    %v332 = vld [vmem:[#allocation2 + $0x2d0] sm:$0xff]
    %v333 = vld [vmem:[#allocation2 + $0x2d8] sm:$0xff]
    %v334 = vld [vmem:[#allocation2 + $0x2e0] sm:$0xff]
    %v335 = vld [vmem:[#allocation2 + $0x2e8] sm:$0xff]
    %v336 = vld [vmem:[#allocation2 + $0x2f0] sm:$0xff]
    %v337 = vld [vmem:[#allocation2 + $0x2f8] sm:$0xff]
    %v338 = vld [vmem:[%s3] sm:$0x7]
    %v340 = vlaneseq
    %v341 = vshrl.u32 %v340, 7
    %v342 = vsub.s32 0, %v341
    %v343 = vrot.slane %v338, %v342
    %v344 = vlaneseq
    %v345 = vshrl.u32 %v344, 7
    %v346 = vsub.s32 1, %v345
    %v347 = vrot.slane %v338, %v346
    %v348 = vlaneseq
    %v349 = vshrl.u32 %v348, 7
    %v350 = vsub.s32 2, %v349
    %v351 = vrot.slane %v338, %v350
    %355 = vmatprep.subr.bf16.mxu0 %v243
    %356 = vmatpush1.bf16.msra.mxu0 %v242
    %357 = vmatprep.subr.bf16.mxu0 %v246
    %358 = vmatpush1.bf16.msra.mxu0 %v245
    %359 = vmatprep.subr.bf16.mxu0 %v249
    %360 = vmatpush1.bf16.msra.mxu0 %v248
    %361 = vmatprep.subr.bf16.mxu0 %v252
    %362 = vmatpush1.bf16.msra.mxu0 %v251
    %363 = vmatprep.subr.bf16.mxu0 %v255
    %364 = vmatpush1.bf16.msra.mxu0 %v254
    %365 = vmatprep.subr.bf16.mxu0 %v258
    %366 = vmatpush1.bf16.msra.mxu0 %v257
    %367 = vmatprep.subr.bf16.mxu0 %v261
    %368 = vmatpush1.bf16.msra.mxu0 %v260
    %369 = vmatprep.subr.bf16.mxu0 %v264
    %370 = vmatpush1.bf16.msra.mxu0 %v263
    %371 = vmatprep.subr.bf16.mxu0 %v267
    %372 = vmatpush1.bf16.msra.mxu0 %v266
    %373 = vmatprep.subr.bf16.mxu0 %v270
    %374 = vmatpush1.bf16.msra.mxu0 %v269
    %375 = vmatprep.subr.bf16.mxu0 %v273
    %376 = vmatpush1.bf16.msra.mxu0 %v272
    %377 = vmatprep.subr.bf16.mxu0 %v276
    %378 = vmatpush1.bf16.msra.mxu0 %v275
    %379 = vmatprep.subr.bf16.mxu0 %v279
    %380 = vmatpush1.bf16.msra.mxu0 %v278
    %381 = vmatprep.subr.bf16.mxu0 %v282
    %382 = vmatpush1.bf16.msra.mxu0 %v281
    %383 = vmatprep.subr.bf16.mxu0 %v285
    %384 = vmatpush1.bf16.msra.mxu0 %v284
    %385 = vmatprep.subr.bf16.mxu0 %v288
    %386 = vmatpush1.bf16.msra.mxu0 %v287
    %387 = vmatprep.mubr.bf16.mxu0 %v239
    %388 = vmatmul.mubr.bf16.gmra.mrb[0].mxu0 %v238
    %v389 = vpop.f32.mrb[0].mxu0
    %v390 = vadd.f32 %v343, %v389
    %v391 = vpop.f32.mrb[0].mxu0
    %v392 = vadd.f32 %v347, %v391
    %v393 = vpop.f32.mrb[0].mxu0
    %v394 = vpop.f32.mrb[0].mxu0
    %395 = vdwg.mxu0
    %396 = vmatprep.subr.bf16.mxu0 %v291
    %397 = vmatpush1.bf16.msra.mxu0 %v290
    %398 = vmatprep.subr.bf16.mxu0 %v294
    %399 = vmatpush1.bf16.msra.mxu0 %v293
    %400 = vmatprep.subr.bf16.mxu0 %v297
    %401 = vmatpush1.bf16.msra.mxu0 %v296
    %402 = vmatprep.subr.bf16.mxu0 %v300
    %403 = vmatpush1.bf16.msra.mxu0 %v299
    %404 = vmatprep.subr.bf16.mxu0 %v303
    %405 = vmatpush1.bf16.msra.mxu0 %v302
    %406 = vmatprep.subr.bf16.mxu0 %v306
    %407 = vmatpush1.bf16.msra.mxu0 %v305
    %408 = vmatprep.subr.bf16.mxu0 %v309
    %409 = vmatpush1.bf16.msra.mxu0 %v308
    %410 = vmatprep.subr.bf16.mxu0 %v312
    %411 = vmatpush1.bf16.msra.mxu0 %v311
    %412 = vmatprep.subr.bf16.mxu0 %v315
    %413 = vmatpush1.bf16.msra.mxu0 %v314
    %414 = vmatprep.subr.bf16.mxu0 %v318
    %415 = vmatpush1.bf16.msra.mxu0 %v317
    %416 = vmatprep.subr.bf16.mxu0 %v321
    %417 = vmatpush1.bf16.msra.mxu0 %v320
    %418 = vmatprep.subr.bf16.mxu0 %v324
    %419 = vmatpush1.bf16.msra.mxu0 %v323
    %420 = vmatprep.subr.bf16.mxu0 %v327
    %421 = vmatpush1.bf16.msra.mxu0 %v326
    %422 = vmatprep.subr.bf16.mxu0 %v330
    %423 = vmatpush1.bf16.msra.mxu0 %v329
    %424 = vmatprep.subr.bf16.mxu0 %v333
    %425 = vmatpush1.bf16.msra.mxu0 %v332
    %426 = vmatprep.subr.bf16.mxu0 %v336
    %427 = vmatpush1.bf16.msra.mxu0 %v335
    %428 = vmatprep.mubr.bf16.mxu0 %v241
    %429 = vmatmul.mubr.bf16.gmra.mrb[0].mxu0 %v240
    %v430 = vpop.f32.mrb[0].mxu0
    %v431 = vadd.f32 %v390, %v430
    %v432 = vpop.f32.mrb[0].mxu0
    %v433 = vadd.f32 %v392, %v432
    %v434 = vpop.f32.mrb[0].mxu0
    %v435 = vpop.f32.mrb[0].mxu0
    %436 = vdwg.mxu0
    %437 = vmatprep.subr.bf16.mxu0 0
    %438 = vmatpush1.bf16.msra.mxu0 %v244
    %439 = vmatprep.subr.bf16.mxu0 0
    %440 = vmatpush1.bf16.msra.mxu0 %v247
    %441 = vmatprep.subr.bf16.mxu0 0
    %442 = vmatpush1.bf16.msra.mxu0 %v250
    %443 = vmatprep.subr.bf16.mxu0 0
    %444 = vmatpush1.bf16.msra.mxu0 %v253
    %445 = vmatprep.subr.bf16.mxu0 0
    %446 = vmatpush1.bf16.msra.mxu0 %v256
    %447 = vmatprep.subr.bf16.mxu0 0
    %448 = vmatpush1.bf16.msra.mxu0 %v259
    %449 = vmatprep.subr.bf16.mxu0 0
    %450 = vmatpush1.bf16.msra.mxu0 %v262
    %451 = vmatprep.subr.bf16.mxu0 0
    %452 = vmatpush1.bf16.msra.mxu0 %v265
    %453 = vmatprep.subr.bf16.mxu0 0
    %454 = vmatpush1.bf16.msra.mxu0 %v268
    %455 = vmatprep.subr.bf16.mxu0 0
    %456 = vmatpush1.bf16.msra.mxu0 %v271
    %457 = vmatprep.subr.bf16.mxu0 0
    %458 = vmatpush1.bf16.msra.mxu0 %v274
    %459 = vmatprep.subr.bf16.mxu0 0
    %460 = vmatpush1.bf16.msra.mxu0 %v277
    %461 = vmatprep.subr.bf16.mxu0 0
    %462 = vmatpush1.bf16.msra.mxu0 %v280
    %463 = vmatprep.subr.bf16.mxu0 0
    %464 = vmatpush1.bf16.msra.mxu0 %v283
    %465 = vmatprep.subr.bf16.mxu0 0
    %466 = vmatpush1.bf16.msra.mxu0 %v286
    %467 = vmatprep.subr.bf16.mxu0 0
    %468 = vmatpush1.bf16.msra.mxu0 %v289
    %469 = vmatprep.mubr.bf16.mxu0 %v239
    %470 = vmatmul.mubr.bf16.gmra.mrb[0].mxu0 %v238
    %v471 = vpop.f32.mrb[0].mxu0
    %v472 = vadd.f32 %v351, %v471
    %v473 = vpop.f32.mrb[0].mxu0
    %v474 = vpop.f32.mrb[0].mxu0
    %v475 = vpop.f32.mrb[0].mxu0
    %476 = vdwg.mxu0
    %477 = vmatprep.subr.bf16.mxu0 0
    %478 = vmatpush1.bf16.msra.mxu0 %v292
    %479 = vmatprep.subr.bf16.mxu0 0
    %480 = vmatpush1.bf16.msra.mxu0 %v295
    %481 = vmatprep.subr.bf16.mxu0 0
    %482 = vmatpush1.bf16.msra.mxu0 %v298
    %483 = vmatprep.subr.bf16.mxu0 0
    %484 = vmatpush1.bf16.msra.mxu0 %v301
    %485 = vmatprep.subr.bf16.mxu0 0
    %486 = vmatpush1.bf16.msra.mxu0 %v304
    %487 = vmatprep.subr.bf16.mxu0 0
    %488 = vmatpush1.bf16.msra.mxu0 %v307
    %489 = vmatprep.subr.bf16.mxu0 0
    %490 = vmatpush1.bf16.msra.mxu0 %v310
    %491 = vmatprep.subr.bf16.mxu0 0
    %492 = vmatpush1.bf16.msra.mxu0 %v313
    %493 = vmatprep.subr.bf16.mxu0 0
    %494 = vmatpush1.bf16.msra.mxu0 %v316
    %495 = vmatprep.subr.bf16.mxu0 0
    %496 = vmatpush1.bf16.msra.mxu0 %v319
    %497 = vmatprep.subr.bf16.mxu0 0
    %498 = vmatpush1.bf16.msra.mxu0 %v322
    %499 = vmatprep.subr.bf16.mxu0 0
    %500 = vmatpush1.bf16.msra.mxu0 %v325
    %501 = vmatprep.subr.bf16.mxu0 0
    %502 = vmatpush1.bf16.msra.mxu0 %v328
    %503 = vmatprep.subr.bf16.mxu0 0
    %504 = vmatpush1.bf16.msra.mxu0 %v331
    %505 = vmatprep.subr.bf16.mxu0 0
    %506 = vmatpush1.bf16.msra.mxu0 %v334
    %507 = vmatprep.subr.bf16.mxu0 0
    %508 = vmatpush1.bf16.msra.mxu0 %v337
    %509 = vmatprep.mubr.bf16.mxu0 %v241
    %510 = vmatmul.mubr.bf16.gmra.mrb[0].mxu0 %v240
    %v511 = vpop.f32.mrb[0].mxu0
    %v512 = vadd.f32 %v472, %v511
    %v513 = vpop.f32.mrb[0].mxu0
    %v514 = vpop.f32.mrb[0].mxu0
    %v515 = vpop.f32.mrb[0].mxu0
    %516 = vdwg.mxu0
    %v517 = vmax.f32 %v431, 0.0
    %v518 = vmax.f32 %v433, 0.0
    %v519 = vmax.f32 %v512, 0.0
    %s520 = smul.u32 4, 48
    %s521 = smul.u32 %s520, 1
    %s522 = sshll.u32 %s521, 4
    %523 = dma.done %s85, %s522
    %v524 = vpack.c.bf16 %v517, %v517
    %v525 = vpack.c.bf16 %v518, %v518
    %v526 = vpack.c.bf16 %v519, %v519
    %v527 = vld [vmem:[#allocation3] sm:$0xff]
    %v528 = vld [vmem:[#allocation3 + $0x8] sm:$0xff]
    %v529 = vld [vmem:[#allocation3 + $0x10] sm:$0xff]
    %v530 = vld [vmem:[#allocation3 + $0x18] sm:$0xff]
    %v531 = vld [vmem:[#allocation3 + $0x20] sm:$0xff]
    %v532 = vld [vmem:[#allocation3 + $0x28] sm:$0xff]
    %v533 = vld [vmem:[#allocation3 + $0x30] sm:$0xff]
    %v534 = vld [vmem:[#allocation3 + $0x38] sm:$0xff]
    %v535 = vld [vmem:[#allocation3 + $0x40] sm:$0xff]
    %v536 = vld [vmem:[#allocation3 + $0x48] sm:$0xff]
    %v537 = vld [vmem:[#allocation3 + $0x50] sm:$0xff]
    %v538 = vld [vmem:[#allocation3 + $0x58] sm:$0xff]
    %v539 = vld [vmem:[#allocation3 + $0x60] sm:$0xff]
    %v540 = vld [vmem:[#allocation3 + $0x68] sm:$0xff]
    %v541 = vld [vmem:[#allocation3 + $0x70] sm:$0xff]
    %v542 = vld [vmem:[#allocation3 + $0x78] sm:$0xff]
    %v543 = vld [vmem:[#allocation3 + $0x80] sm:$0xff]
    %v544 = vld [vmem:[#allocation3 + $0x88] sm:$0xff]
    %v545 = vld [vmem:[#allocation3 + $0x90] sm:$0xff]
    %v546 = vld [vmem:[#allocation3 + $0x98] sm:$0xff]
    %v547 = vld [vmem:[#allocation3 + $0xa0] sm:$0xff]
    %v548 = vld [vmem:[#allocation3 + $0xa8] sm:$0xff]
    %v549 = vld [vmem:[#allocation3 + $0xb0] sm:$0xff]
    %v550 = vld [vmem:[#allocation3 + $0xb8] sm:$0xff]
    %v551 = vld [vmem:[%s4] sm:$0x1]
    %v553 = vlaneseq
    %v554 = vshrl.u32 %v553, 7
    %v555 = vsub.s32 0, %v554
    %v556 = vrot.slane %v551, %v555
    %558 = vmatprep.subr.bf16.mxu0 0
    %559 = vmatpush1.bf16.msra.mxu0 %v527
    %560 = vmatprep.subr.bf16.mxu0 0
    %561 = vmatpush1.bf16.msra.mxu0 %v528
    %562 = vmatprep.subr.bf16.mxu0 0
    %563 = vmatpush1.bf16.msra.mxu0 %v529
    %564 = vmatprep.subr.bf16.mxu0 0
    %565 = vmatpush1.bf16.msra.mxu0 %v530
    %566 = vmatprep.subr.bf16.mxu0 0
    %567 = vmatpush1.bf16.msra.mxu0 %v531
    %568 = vmatprep.subr.bf16.mxu0 0
    %569 = vmatpush1.bf16.msra.mxu0 %v532
    %570 = vmatprep.subr.bf16.mxu0 0
    %571 = vmatpush1.bf16.msra.mxu0 %v533
    %572 = vmatprep.subr.bf16.mxu0 0
    %573 = vmatpush1.bf16.msra.mxu0 %v534
    %574 = vmatprep.subr.bf16.mxu0 0
    %575 = vmatpush1.bf16.msra.mxu0 %v535
    %576 = vmatprep.subr.bf16.mxu0 0
    %577 = vmatpush1.bf16.msra.mxu0 %v536
    %578 = vmatprep.subr.bf16.mxu0 0
    %579 = vmatpush1.bf16.msra.mxu0 %v537
    %580 = vmatprep.subr.bf16.mxu0 0
    %581 = vmatpush1.bf16.msra.mxu0 %v538
    %582 = vmatprep.subr.bf16.mxu0 0
    %583 = vmatpush1.bf16.msra.mxu0 %v539
    %584 = vmatprep.subr.bf16.mxu0 0
    %585 = vmatpush1.bf16.msra.mxu0 %v540
    %586 = vmatprep.subr.bf16.mxu0 0
    %587 = vmatpush1.bf16.msra.mxu0 %v541
    %588 = vmatprep.subr.bf16.mxu0 0
    %589 = vmatpush1.bf16.msra.mxu0 %v542
    %590 = vmatprep.mubr.bf16.mxu0 %v525
    %591 = vmatmul.mubr.bf16.gmra.mrb[0].mxu0 %v524
    %v592 = vpop.f32.mrb[0].mxu0
    %v593 = vadd.f32 %v556, %v592
    %v594 = vpop.f32.mrb[0].mxu0
    %v595 = vpop.f32.mrb[0].mxu0
    %v596 = vpop.f32.mrb[0].mxu0
    %597 = vdwg.mxu0
    %598 = vmatprep.subr.bf16.mxu0 0
    %599 = vmatpush1.bf16.msra.mxu0 %v543
    %600 = vmatprep.subr.bf16.mxu0 0
    %601 = vmatpush1.bf16.msra.mxu0 %v544
    %602 = vmatprep.subr.bf16.mxu0 0
    %603 = vmatpush1.bf16.msra.mxu0 %v545
    %604 = vmatprep.subr.bf16.mxu0 0
    %605 = vmatpush1.bf16.msra.mxu0 %v546
    %606 = vmatprep.subr.bf16.mxu0 0
    %607 = vmatpush1.bf16.msra.mxu0 %v547
    %608 = vmatprep.subr.bf16.mxu0 0
    %609 = vmatpush1.bf16.msra.mxu0 %v548
    %610 = vmatprep.subr.bf16.mxu0 0
    %611 = vmatpush1.bf16.msra.mxu0 %v549
    %612 = vmatprep.subr.bf16.mxu0 0
    %613 = vmatpush1.bf16.msra.mxu0 %v550
    %614 = vmatprep.subr.bf16.mxu0 0
    %615 = vmatpush1.bf16.msra.mxu0 0
    %616 = vmatprep.subr.bf16.mxu0 0
    %617 = vmatpush1.bf16.msra.mxu0 0
    %618 = vmatprep.subr.bf16.mxu0 0
    %619 = vmatpush1.bf16.msra.mxu0 0
    %620 = vmatprep.subr.bf16.mxu0 0
    %621 = vmatpush1.bf16.msra.mxu0 0
    %622 = vmatprep.subr.bf16.mxu0 0
    %623 = vmatpush1.bf16.msra.mxu0 0
    %624 = vmatprep.subr.bf16.mxu0 0
    %625 = vmatpush1.bf16.msra.mxu0 0
    %626 = vmatprep.subr.bf16.mxu0 0
    %627 = vmatpush1.bf16.msra.mxu0 0
    %628 = vmatprep.subr.bf16.mxu0 0
    %629 = vmatpush1.bf16.msra.mxu0 0
    %630 = vmatprep.mubr.bf16.mxu0 0
    %631 = vmatmul.mubr.bf16.gmra.mrb[0].mxu0 %v526
    %v632 = vpop.f32.mrb[0].mxu0
    %v633 = vadd.f32 %v593, %v632
    %v634 = vpop.f32.mrb[0].mxu0
    %v635 = vpop.f32.mrb[0].mxu0
    %v636 = vpop.f32.mrb[0].mxu0
    %637 = vdwg.mxu0
    %v638 = vtanh.pop %v633
    %v639 = vmul.f32 %v638, 2.0
    %640 = vst [vmem:[#allocation10] sm:$0x3] %v639
    // Predicated region
    $region34: #{tpu_custom_call.1} parent=1 // pred_check
      _
    $region35: #{tpu_custom_call.1} parent=1 // pred_check_branch
      %642 = sbr.rel (0) target = $region37
    $region36: #{tpu_custom_call.1} parent=1 // pred_region
      %s644 = ssub.s32 32, 32
      %645 = vsyncadd [#allocation7], %s644
      %s647 = sshll.u32 [#allocation10], 4
      %s648 = int_to_ptr.vmem [resolvable:$true] %s647
      %650 = dma.vmem_to_hbm [thread:$0]  %s648, 32, %s7, [#allocation7]
    $region37: #{tpu_custom_call.1} parent=1 // pred_fallthru
      _
    // Predicated region
    $region38: #{tpu_custom_call.1} parent=1 // pred_check
      _
    $region39: #{tpu_custom_call.1} parent=1 // pred_check_branch
      %652 = sbr.rel (0) target = $region41
    $region40: #{tpu_custom_call.1} parent=1 // pred_region
      %653 = dma.done [#allocation7], 32
    $region41: #{tpu_custom_call.1} parent=1 // pred_fallthru
      _
    %654 = vsyncpa [#allocation6], 1
    %655 = vsyncpa [#allocation9], 1
    %656 = vsyncpa [#allocation7], 1
  %657 = vsyncmov [#allocation4]
  %s658 = vpop.sfrf %657
  %p659 = scmp.eq.s32.totalorder %s658, 0
  %p660 = pneg %p659
  %662 = shalt.err (%p660)
  %s663 = scalar_lea.sflag [#allocation4], 1
  %664 = vsyncmov %s663
  %s665 = vpop.sfrf %664
  %p666 = scmp.eq.s32.totalorder %s665, 0
  %p667 = pneg %p666
  %669 = shalt.err (%p667)

</llo_original>
